<compile_context>
chip_gen: v7x
topology: tpu7x:2x2x1
jax: 0.10.0
libtpu: 0.0.40
codegen_flags: <defaults>
</compile_context>

<pallas_src>
import functools

import jax
import jax.numpy as jnp
from jax import lax
from jax.experimental import pallas as pl
from jax.experimental.pallas import tpu as pltpu


def _tv_kernel(x_ref, row_ref, htv_ref, wtv_ref, acc_h_ref, acc_w_ref, *,
               nb, tbc, chunk, n_chunks, bc, h, w, pad_needed):
    i = pl.program_id(0)          # core-split ("parallel") axis
    j = pl.program_id(1)          # block ("arbitrary" / accumulation) axis
    L = h * w
    shift_w = 1 % L               # flat roll for the W-neighbour
    shift_h = w % L               # flat roll for the H-neighbour

    @pl.when(j == 0)
    def _init():
        acc_h_ref[...] = jnp.zeros_like(acc_h_ref)
        acc_w_ref[...] = jnp.zeros_like(acc_w_ref)

    blk = i * nb + j              # logical (un-clamped) block id

    def accumulate(masked):
        def step(c, carry):
            if n_chunks == 1:
                xs = x_ref[...]
            else:
                off = pl.multiple_of(c * chunk, chunk)
                xs = x_ref[pl.ds(off, chunk), :]
            xs = xs.astype(jnp.float32)                    # (chunk, L)
            if masked:
                # Zero planes whose logical index is past the real B*C extent
                # (ragged last block / clamped duplicate grid steps -> 0).
                plane = (blk * tbc + c * chunk
                         + lax.broadcasted_iota(jnp.int32, (chunk, L), 0))
                xs = jnp.where(plane < bc, xs, 0.0)
            dh = pltpu.roll(xs, shift=shift_h, axis=1) - xs
            dw = pltpu.roll(xs, shift=shift_w, axis=1) - xs
            acc_h_ref[...] += dh * dh
            acc_w_ref[...] += dw * dw
            return carry

        if n_chunks == 1:
            step(0, 0)
        else:
            lax.fori_loop(0, n_chunks, step, 0,
                          unroll=n_chunks if n_chunks <= 4 else 4)

    if pad_needed:
        is_partial = (blk + 1) * tbc > bc

        @pl.when(jnp.logical_not(is_partial))
        def _full_block():
            accumulate(False)

        @pl.when(is_partial)
        def _partial_block():
            accumulate(True)
    else:
        accumulate(False)

    @pl.when(j == nb - 1)
    def _finalize():
        # Validity masks, built once per core with the SAME rolls as the data:
        # a lane holds a true adjacent difference iff its rolled source index
        # differs by exactly +-shift (drops wrapped positions for either roll
        # direction); W-pairs additionally require the same row.
        f = lax.broadcasted_iota(jnp.int32, (1, L), 1)
        r = row_ref[...]                                     # (1, L) row ids
        dh_idx = pltpu.roll(f, shift=shift_h, axis=1) - f
        dw_idx = pltpu.roll(f, shift=shift_w, axis=1) - f
        r_rot = pltpu.roll(r, shift=shift_w, axis=1)
        mh = ((dh_idx == w) | (dh_idx == -w)).astype(jnp.float32)
        mw = (((dw_idx == 1) | (dw_idx == -1)) & (r_rot == r)
              ).astype(jnp.float32)
        if h == 2:           # wrapped H positions describe the same pair twice
            mh = mh * 0.5
        if L == 2:           # degenerate 1x2 plane: same for the W pair
            mw = mw * 0.5
        ah = jnp.sum(acc_h_ref[...], axis=0, keepdims=True)   # (1, L)
        aw = jnp.sum(acc_w_ref[...], axis=0, keepdims=True)
        htv_ref[0, 0] = jnp.sum(ah * mh)
        wtv_ref[0, 0] = jnp.sum(aw * mw)


def _default_num_cores():
    # 2 TensorCores visible to one Pallas program (megacore / v7x), else 1.
    try:
        kind = jax.devices()[0].device_kind.lower()
    except Exception:  # pragma: no cover - defensive
        return 1
    return 2 if any(t in kind for t in ("v7", "v5p", "v4")) else 1


def tv_loss(x, tvloss_weight=1.0, *,
            target_block_bytes=8 * 1024 * 1024,
            chunk_bytes=512 * 1024,
            num_cores=None):
    """Pallas TPU equivalent of TVLoss.forward on an NCHW tensor."""
    b, c, h, w = x.shape
    bc = b * c
    L = h * w
    x_flat = x.reshape(bc, L)                 # lane-dense view, no HBM copy

    itemsize = jnp.dtype(x.dtype).itemsize
    sub = max(8, 32 // itemsize)              # sublane tile for native dtype
    plane_f32 = L * 4
    plane_nat = L * itemsize

    # Planes per inner compute step: bounds the live f32 temporaries in VMEM.
    chunk = max(sub, (max(1, chunk_bytes // plane_f32) // sub) * sub)
    if chunk >= bc:
        chunk = bc
        n_chunks = 1
        tbc = bc
    else:
        # Planes per grid step: sized by native-dtype DMA bytes per step.
        n_chunks = max(1, target_block_bytes // (chunk * plane_nat))
        tbc = chunk * n_chunks
        if tbc > bc:
            n_chunks = max(1, bc // chunk)
            tbc = chunk * n_chunks
    # TODO(synk): single planes so large that even `sub` of them overflow the
    # VMEM budget would need an intra-plane split with a 1-element halo.

    total_blocks = pl.cdiv(bc, tbc)
    nc_req = _default_num_cores() if num_cores is None else num_cores
    nc = int(max(1, min(nc_req, total_blocks)))
    nb = pl.cdiv(total_blocks, nc)
    last_block = total_blocks - 1
    pad_needed = (nc * nb * tbc) != bc

    def x_index_map(i, j):
        # Clamp so ragged/duplicate steps never DMA a fully out-of-bounds
        # block; their contribution is masked in-kernel via the logical index.
        return (jnp.minimum(i * nb + j, last_block), 0)

    # Row index of every flattened position (tiny, DMA'd once, used only in
    # the finalize to build the "same row" check for W-neighbours).
    row_ids = (jnp.arange(L, dtype=jnp.int32) // w).reshape(1, L)

    kernel = functools.partial(_tv_kernel, nb=nb, tbc=tbc, chunk=chunk,
                               n_chunks=n_chunks, bc=bc, h=h, w=w,
                               pad_needed=pad_needed)

    cost = pl.CostEstimate(
        flops=8 * bc * L,
        transcendentals=0,
        bytes_accessed=int(x.size) * itemsize + L * 4 + 2 * nc * 4,
    )

    h_parts, w_parts = pl.pallas_call(
        kernel,
        out_shape=(
            jax.ShapeDtypeStruct((nc, 1), jnp.float32),
            jax.ShapeDtypeStruct((nc, 1), jnp.float32),
        ),
        grid_spec=pltpu.PrefetchScalarGridSpec(
            num_scalar_prefetch=0,
            grid=(nc, nb),
            in_specs=[
                pl.BlockSpec((tbc, L), x_index_map),
                pl.BlockSpec((1, L), lambda i, j: (0, 0)),
            ],
            out_specs=[
                pl.BlockSpec((1, 1), lambda i, j: (i, 0),
                             memory_space=pltpu.SMEM),
                pl.BlockSpec((1, 1), lambda i, j: (i, 0),
                             memory_space=pltpu.SMEM),
            ],
            scratch_shapes=[
                pltpu.VMEM((chunk, L), jnp.float32),
                pltpu.VMEM((chunk, L), jnp.float32),
            ],
        ),
        compiler_params=pltpu.CompilerParams(
            dimension_semantics=("parallel", "arbitrary"),
            vmem_limit_bytes=32 * 1024 * 1024,
        ),
        cost_estimate=cost,
    )(x_flat, row_ids)

    h_tv = jnp.sum(h_parts)
    w_tv = jnp.sum(w_parts)
    # Same normalization (and same h==1 / w==1 divide-by-zero hazard) as the
    # original PyTorch module.
    count_h = c * (h - 1) * w
    count_w = c * h * (w - 1)
    return tvloss_weight * 2.0 * (h_tv / count_h + w_tv / count_w) / b


def _tv_loss_ref(x, tvloss_weight=1.0):
    x = x.astype(jnp.float32)
    b, c, h, w = x.shape
    h_tv = jnp.sum((x[:, :, 1:, :] - x[:, :, :-1, :]) ** 2)
    w_tv = jnp.sum((x[:, :, :, 1:] - x[:, :, :, :-1]) ** 2)
    count_h = c * (h - 1) * w
    count_w = c * h * (w - 1)
    return tvloss_weight * 2.0 * (h_tv / count_h + w_tv / count_w) / b


if __name__ == "__main__":
    key = jax.random.PRNGKey(0)
    k1, k2, k3, k4 = jax.random.split(key, 4)

    # 1) Canonical small shape, default sizing (single block, single core).
    x1 = jax.random.normal(k1, (2, 4, 16, 16), dtype=jnp.float32)
    out1 = jax.block_until_ready(tv_loss(x1, tvloss_weight=1.0))
    ref1 = _tv_loss_ref(x1, tvloss_weight=1.0)
    assert jnp.allclose(out1, ref1, rtol=1e-5, atol=1e-5), (out1, ref1)

    # 2) Forced tiny blocks + explicit 2-way core split: multi-step
    #    accumulation, multi-chunk inner loop, ragged last block and clamped
    #    duplicate grid steps (masked path).
    x2 = jax.random.normal(k2, (2, 17, 16, 16), dtype=jnp.float32)
    out2 = jax.block_until_ready(
        tv_loss(x2, tvloss_weight=0.5,
                target_block_bytes=16 * 1024, chunk_bytes=8 * 1024,
                num_cores=2))
    ref2 = _tv_loss_ref(x2, tvloss_weight=0.5)
    assert jnp.allclose(out2, ref2, rtol=1e-5, atol=1e-5), (out2, ref2)

    # 3) bf16 input streams in native dtype (half the HBM bytes), f32 math.
    x3 = jax.random.normal(k3, (2, 4, 16, 16),
                           dtype=jnp.float32).astype(jnp.bfloat16)
    out3 = jax.block_until_ready(tv_loss(x3))
    ref3 = _tv_loss_ref(x3)
    assert jnp.allclose(out3, ref3, rtol=1e-3, atol=1e-3), (out3, ref3)

    # 4) B*C not a multiple of the sublane tile and a different plane geometry.
    x4 = jax.random.normal(k4, (1, 6, 8, 16), dtype=jnp.float32)
    out4 = jax.block_until_ready(tv_loss(x4, tvloss_weight=2.0))
    ref4 = _tv_loss_ref(x4, tvloss_weight=2.0)
    assert jnp.allclose(out4, ref4, rtol=1e-5, atol=1e-5), (out4, ref4)

    print("KERNEL_OK")
</pallas_src>

<mosaic_0001>
module attributes {stable_mosaic.version = 11 : i64} {
  func.func @_tv_kernel(%arg0: i32, %arg1: i32, %arg2: memref<8x256xf32, #tpu.memory_space<vmem>>, %arg3: memref<1x256xi32, #tpu.memory_space<vmem>>, %arg4: memref<1x1xf32, #tpu.memory_space<smem>>, %arg5: memref<1x1xf32, #tpu.memory_space<smem>>, %arg6: memref<8x256xf32, #tpu.memory_space<vmem>>, %arg7: memref<8x256xf32, #tpu.memory_space<vmem>>) attributes {dimension_semantics = [#tpu.dimension_semantics<parallel>, #tpu.dimension_semantics<arbitrary>], iteration_bounds = array<i64: 1, 1>, scalar_prefetch = 0 : i64, scratch_operands = 2 : i64, tpu.core_type = #tpu.core_type<tc>, window_params = [{transform_indices = @transform_0, window_bounds = array<i64: 8, 256>}, {pipeline_mode = #tpu.pipeline_mode<synchronous>, transform_indices = @transform_1, window_bounds = array<i64: 1, 256>}, {transform_indices = @transform_2, window_bounds = array<i64: 1, 1>}, {transform_indices = @transform_3, window_bounds = array<i64: 1, 1>}]} {
    %c0_i32 = arith.constant 0 : i32
    %0 = arith.cmpi eq, %arg1, %c0_i32 : i32
    %1 = arith.extui %0 : i1 to i32
    %c0_i32_0 = arith.constant 0 : i32
    %2 = arith.cmpi ne, %1, %c0_i32_0 : i32
    scf.if %2 {
      %cst = arith.constant 0.000000e+00 : f32
      %19 = vector.broadcast %cst : f32 to vector<8x256xf32>
      %c0_12 = arith.constant 0 : index
      %c0_13 = arith.constant 0 : index
      %20 = vector.load %arg6[%c0_12, %c0_13] : memref<8x256xf32, #tpu.memory_space<vmem>>, vector<8x256xf32>
      tpu.vector_store %arg6[%c0_12, %c0_13], %19 {strides = array<i32>} : memref<8x256xf32, #tpu.memory_space<vmem>>, vector<8x256xf32>,
      %cst_14 = arith.constant 0.000000e+00 : f32
      %21 = vector.broadcast %cst_14 : f32 to vector<8x256xf32>
      %c0_15 = arith.constant 0 : index
      %c0_16 = arith.constant 0 : index
      %22 = vector.load %arg7[%c0_15, %c0_16] : memref<8x256xf32, #tpu.memory_space<vmem>>, vector<8x256xf32>
      tpu.vector_store %arg7[%c0_15, %c0_16], %21 {strides = array<i32>} : memref<8x256xf32, #tpu.memory_space<vmem>>, vector<8x256xf32>,
    } else {
    }
    %c0 = arith.constant 0 : index
    %c0_1 = arith.constant 0 : index
    %3 = vector.load %arg2[%c0, %c0_1] : memref<8x256xf32, #tpu.memory_space<vmem>>, vector<8x256xf32>
    %c16_i32 = arith.constant 16 : i32
    %4 = tpu.dynamic_rotate %3 by %c16_i32 dim 1 : vector<8x256xf32>, i32 -> vector<8x256xf32>
    %5 = arith.subf %4, %3 : vector<8x256xf32>
    %c1_i32 = arith.constant 1 : i32
    %6 = tpu.dynamic_rotate %3 by %c1_i32 dim 1 : vector<8x256xf32>, i32 -> vector<8x256xf32>
    %7 = arith.subf %6, %3 : vector<8x256xf32>
    %c0_2 = arith.constant 0 : index
    %c0_3 = arith.constant 0 : index
    %8 = vector.load %arg6[%c0_2, %c0_3] : memref<8x256xf32, #tpu.memory_space<vmem>>, vector<8x256xf32>
    %9 = arith.mulf %5, %5 : vector<8x256xf32>
    %10 = arith.addf %8, %9 : vector<8x256xf32>
    %c0_4 = arith.constant 0 : index
    %c0_5 = arith.constant 0 : index
    %11 = vector.load %arg6[%c0_4, %c0_5] : memref<8x256xf32, #tpu.memory_space<vmem>>, vector<8x256xf32>
    tpu.vector_store %arg6[%c0_4, %c0_5], %10 {strides = array<i32>} : memref<8x256xf32, #tpu.memory_space<vmem>>, vector<8x256xf32>,
    %c0_6 = arith.constant 0 : index
    %c0_7 = arith.constant 0 : index
    %12 = vector.load %arg7[%c0_6, %c0_7] : memref<8x256xf32, #tpu.memory_space<vmem>>, vector<8x256xf32>
    %13 = arith.mulf %7, %7 : vector<8x256xf32>
    %14 = arith.addf %12, %13 : vector<8x256xf32>
    %c0_8 = arith.constant 0 : index
    %c0_9 = arith.constant 0 : index
    %15 = vector.load %arg7[%c0_8, %c0_9] : memref<8x256xf32, #tpu.memory_space<vmem>>, vector<8x256xf32>
    tpu.vector_store %arg7[%c0_8, %c0_9], %14 {strides = array<i32>} : memref<8x256xf32, #tpu.memory_space<vmem>>, vector<8x256xf32>,
    %c0_i32_10 = arith.constant 0 : i32
    %16 = arith.cmpi eq, %arg1, %c0_i32_10 : i32
    %17 = arith.extui %16 : i1 to i32
    %c0_i32_11 = arith.constant 0 : i32
    %18 = arith.cmpi ne, %17, %c0_i32_11 : i32
    scf.if %18 {
      %19 = tpu.iota {dimensions = array<i32: 1>} : vector<1x256xi32>
      %c0_12 = arith.constant 0 : index
      %c0_13 = arith.constant 0 : index
      %20 = vector.load %arg3[%c0_12, %c0_13] : memref<1x256xi32, #tpu.memory_space<vmem>>, vector<1x256xi32>
      %c16_i32_14 = arith.constant 16 : i32
      %21 = tpu.dynamic_rotate %19 by %c16_i32_14 dim 1 : vector<1x256xi32>, i32 -> vector<1x256xi32>
      %22 = arith.subi %21, %19 : vector<1x256xi32>
      %c1_i32_15 = arith.constant 1 : i32
      %23 = tpu.dynamic_rotate %19 by %c1_i32_15 dim 1 : vector<1x256xi32>, i32 -> vector<1x256xi32>
      %24 = arith.subi %23, %19 : vector<1x256xi32>
      %c1_i32_16 = arith.constant 1 : i32
      %25 = tpu.dynamic_rotate %20 by %c1_i32_16 dim 1 : vector<1x256xi32>, i32 -> vector<1x256xi32>
      %c16_i32_17 = arith.constant 16 : i32
      %26 = vector.broadcast %c16_i32_17 : i32 to vector<1x256xi32>
      %27 = arith.cmpi eq, %22, %26 : vector<1x256xi32>
      %c-16_i32 = arith.constant -16 : i32
      %28 = vector.broadcast %c-16_i32 : i32 to vector<1x256xi32>
      %29 = arith.cmpi eq, %22, %28 : vector<1x256xi32>
      %30 = arith.ori %27, %29 : vector<1x256xi1>
      %31 = arith.extui %30 : vector<1x256xi1> to vector<1x256xi32>
      %32 = arith.sitofp %31 : vector<1x256xi32> to vector<1x256xf32>
      %c1_i32_18 = arith.constant 1 : i32
      %33 = vector.broadcast %c1_i32_18 : i32 to vector<1x256xi32>
      %34 = arith.cmpi eq, %24, %33 : vector<1x256xi32>
      %c-1_i32 = arith.constant -1 : i32
      %35 = vector.broadcast %c-1_i32 : i32 to vector<1x256xi32>
      %36 = arith.cmpi eq, %24, %35 : vector<1x256xi32>
      %37 = arith.ori %34, %36 : vector<1x256xi1>
      %38 = arith.cmpi eq, %25, %20 : vector<1x256xi32>
      %39 = arith.andi %37, %38 : vector<1x256xi1>
      %40 = arith.extui %39 : vector<1x256xi1> to vector<1x256xi32>
      %41 = arith.sitofp %40 : vector<1x256xi32> to vector<1x256xf32>
      %c0_19 = arith.constant 0 : index
      %c0_20 = arith.constant 0 : index
      %42 = vector.load %arg6[%c0_19, %c0_20] : memref<8x256xf32, #tpu.memory_space<vmem>>, vector<8x256xf32>
      %cst = arith.constant dense<0.000000e+00> : vector<256xf32>
      %43 = vector.multi_reduction <add>, %42, %cst [0] : vector<8x256xf32> to vector<256xf32>
      %44 = vector.shape_cast %43 : vector<256xf32> to vector<1x256xf32>
      %c0_21 = arith.constant 0 : index
      %c0_22 = arith.constant 0 : index
      %45 = vector.load %arg7[%c0_21, %c0_22] : memref<8x256xf32, #tpu.memory_space<vmem>>, vector<8x256xf32>
      %cst_23 = arith.constant dense<0.000000e+00> : vector<256xf32>
      %46 = vector.multi_reduction <add>, %45, %cst_23 [0] : vector<8x256xf32> to vector<256xf32>
      %47 = vector.shape_cast %46 : vector<256xf32> to vector<1x256xf32>
      %48 = arith.mulf %44, %32 : vector<1x256xf32>
      %49 = vector.shape_cast %48 : vector<1x256xf32> to vector<1x1x256xf32>
      %cst_24 = arith.constant dense<0.000000e+00> : vector<1xf32>
      %50 = vector.multi_reduction <add>, %49, %cst_24 [1, 2] : vector<1x1x256xf32> to vector<1xf32>
      %51 = vector.shape_cast %50 : vector<1xf32> to vector<1x1x1xf32>
      %52 = vector.extract %51[0, 0, 0] : f32 from vector<1x1x1xf32>
      %c0_25 = arith.constant 0 : index
      %c0_26 = arith.constant 0 : index
      %53 = memref.load %arg4[%c0_25, %c0_26] : memref<1x1xf32, #tpu.memory_space<smem>>
      memref.store %52, %arg4[%c0_25, %c0_26] : memref<1x1xf32, #tpu.memory_space<smem>>
      %54 = arith.mulf %47, %41 : vector<1x256xf32>
      %55 = vector.shape_cast %54 : vector<1x256xf32> to vector<1x1x256xf32>
      %cst_27 = arith.constant dense<0.000000e+00> : vector<1xf32>
      %56 = vector.multi_reduction <add>, %55, %cst_27 [1, 2] : vector<1x1x256xf32> to vector<1xf32>
      %57 = vector.shape_cast %56 : vector<1xf32> to vector<1x1x1xf32>
      %58 = vector.extract %57[0, 0, 0] : f32 from vector<1x1x1xf32>
      %c0_28 = arith.constant 0 : index
      %c0_29 = arith.constant 0 : index
      %59 = memref.load %arg5[%c0_28, %c0_29] : memref<1x1xf32, #tpu.memory_space<smem>>
      memref.store %58, %arg5[%c0_28, %c0_29] : memref<1x1xf32, #tpu.memory_space<smem>>
    } else {
    }
    return
  }
  func.func @transform_0(%arg0: i32, %arg1: i32) -> (i32, i32) {
    %c1_i32 = arith.constant 1 : i32
    %0 = arith.muli %arg0, %c1_i32 : i32
    %1 = arith.addi %0, %arg1 : i32
    %c0_i32 = arith.constant 0 : i32
    %2 = arith.minsi %1, %c0_i32 : i32
    %c0_i32_0 = arith.constant 0 : i32
    %c0_i32_1 = arith.constant 0 : i32
    return %2, %c0_i32_0 : i32, i32
  }
  func.func @transform_1(%arg0: i32, %arg1: i32) -> (i32, i32) {
    %c0_i32 = arith.constant 0 : i32
    %c0_i32_0 = arith.constant 0 : i32
    %c0_i32_1 = arith.constant 0 : i32
    return %c0_i32, %c0_i32_0 : i32, i32
  }
  func.func @transform_2(%arg0: i32, %arg1: i32) -> (i32, i32) {
    %c0_i32 = arith.constant 0 : i32
    %c0_i32_0 = arith.constant 0 : i32
    return %arg0, %c0_i32 : i32, i32
  }
  func.func @transform_3(%arg0: i32, %arg1: i32) -> (i32, i32) {
    %c0_i32 = arith.constant 0 : i32
    %c0_i32_0 = arith.constant 0 : i32
    return %arg0, %c0_i32 : i32, i32
  }
}

</mosaic_0001>

<llo_original>
// kernel: tpu_custom_call.1
$region0: #{tpu_custom_call.1}
  #allocation0 [shape = 'u32[]', space=smem, size = 0x4, offset = 0x4, fixed_abs, tag = 'smem constant byte address 0x4 - core index']
  #allocation1 [shape = 'u32[144,128]{1,0:T(1,128)}', space=vmem, size = 0x12000, scoped, tag = 'internal scratch']
  #allocation2 [shape = 'f32[8,256]{1,0:T(8,128)}', space=vmem, size = 0x2000, scoped, tag = 'scratch operand']
  #allocation3 [shape = 'f32[8,256]{1,0:T(8,128)}', space=vmem, size = 0x2000, scoped, tag = 'scratch operand']
  %s0 = inlined_call_operand.hbm [shape: f32[8,256], index: 0, kind: input, shape index: {}]
  %s1 = inlined_call_operand.vmem [shape: s32[1,256], index: 1, kind: input, shape index: {}]
  %s2 = inlined_call_operand.hbm [shape: f32[1,1], index: 2, kind: output, shape index: {0}]
  %s3 = inlined_call_operand.hbm [shape: f32[1,1], index: 3, kind: output, shape index: {1}]
  %4 = xla_tuple %s2, %s3
  %s5 = sld [smem:[#allocation0]]
  $region38: #{tpu_custom_call.1} parent=0
    _
  %s7 = ssub.s32 1, %s5
  %s8 = scalar_select 0, %s7, %s5
  $region1: #{tpu_custom_call.1} parent=0
    #allocation4 [shape = 'u8[8192]{0}', space=vmem, size = 0x2000, scoped, tag = 'input window, operand 0, single buffered']
    #allocation5 [shape = 's32[1]{0}', space=sflag, size = 0x4, scoped, tag = 'scoped memory for tpu_custom_call.1']
    #allocation6 [shape = 's32[1]{0}', space=sflag, size = 0x4, scoped, tag = 'scoped memory for tpu_custom_call.1']
    #allocation7 [shape = 'u8[512]{0}', space=smem, size = 0x200, scoped, tag = 'output window, operand 0, single buffered']
    #allocation8 [shape = 'u8[512]{0}', space=smem, size = 0x200, scoped, tag = 'output window, operand 1, single buffered']
    #allocation9 [shape = 's32[1]{0}', space=sflag, size = 0x4, scoped, tag = 'scoped memory for tpu_custom_call.1']
    %9 = vsyncpa [#allocation5], 0
    %10 = vsyncpa [#allocation6], 0
    %11 = vsyncpa [#allocation9], 0
    // Predicated region
    $region2: #{tpu_custom_call.1} parent=1 // pred_check
      _
    $region3: #{tpu_custom_call.1} parent=1 // pred_check_branch
      %13 = sbr.rel (0) target = $region5
    $region4: #{tpu_custom_call.1} parent=1 // pred_region
      %s14 = sadd.s32 0, 0
      %p15 = scmp.lt.s32.totalorder %s14, 0
      %s16 = scalar_select %p15, %s14, 0
      %s18 = ssub.s32 256, 256
      %19 = vsyncadd [#allocation5], %s18
      %s20 = smul.addr %s16, 2
      %s21 = smul.addr %s20, 128
      %s22 = scalar_lea.hbm %s0, %s21
      %s24 = sshll.u32 [#allocation4], 4
      %s25 = int_to_ptr.vmem [resolvable:$true] %s24
      %27 = dma.hbm_to_vmem [thread:$0]  %s22, 256, %s25, [#allocation5]
    $region5: #{tpu_custom_call.1} parent=1 // pred_fallthru
      _
    // Predicated region
    $region6: #{tpu_custom_call.1} parent=1 // pred_check
      _
    $region7: #{tpu_custom_call.1} parent=1 // pred_check_branch
      %29 = sbr.rel (0) target = $region9
    $region8: #{tpu_custom_call.1} parent=1 // pred_region
      _
    $region9: #{tpu_custom_call.1} parent=1 // pred_fallthru
      _
    // Predicated region
    $region10: #{tpu_custom_call.1} parent=1 // pred_check
      _
    $region11: #{tpu_custom_call.1} parent=1 // pred_check_branch
      %31 = sbr.rel (0) target = $region13
    $region12: #{tpu_custom_call.1} parent=1 // pred_region
      %32 = dma.done [#allocation5], 256
    $region13: #{tpu_custom_call.1} parent=1 // pred_fallthru
      _
    %s33 = sadd.s32 0, 0
    %p34 = scmp.lt.s32.totalorder %s33, 0
    %s35 = scalar_select %p34, %s33, 0
    %p36 = scmp.eq.s32.totalorder 0, 0
    // Predicated region
    $region14: #{tpu_custom_call.1} parent=1 // pred_check
      %p37 = pneg %p36
    $region15: #{tpu_custom_call.1} parent=1 // pred_check_branch
      %39 = sbr.rel (%p37) target = $region17
    $region16: #{tpu_custom_call.1} parent=1 // pred_region
      %40 = vst [vmem:[#allocation2] sm:$0xff] 0.0
      %41 = vst [vmem:[#allocation2 + $0x8] sm:$0xff] 0.0
      %42 = vst [vmem:[#allocation3] sm:$0xff] 0.0
      %43 = vst [vmem:[#allocation3 + $0x8] sm:$0xff] 0.0
    $region17: #{tpu_custom_call.1} parent=1 // pred_fallthru
      _
    %v44 = vld [vmem:[#allocation4] sm:$0xff]
    %v45 = vld [vmem:[#allocation4 + $0x8] sm:$0xff]
    %46 = vrot.lane.b32.xlu0 %v44, 16
    %v47 = vpop.permute.xlu0 %46
    %48 = vrot.lane.b32.xlu0 %v45, 16
    %v49 = vpop.permute.xlu0 %48
    %v50 = vlaneseq
    %v51 = vand.u32 %v50, 127
    %vm52 = vcmp.lt.s32.totalorder %v51, 16
    %v53 = vsel %vm52, %v47, %v49
    %v54 = vsel %vm52, %v49, %v47
    %v55 = vsub.f32 %v54, %v44
    %v56 = vsub.f32 %v53, %v45
    %57 = vrot.lane.b32.xlu0 %v44, 1
    %v58 = vpop.permute.xlu0 %57
    %59 = vrot.lane.b32.xlu0 %v45, 1
    %v60 = vpop.permute.xlu0 %59
    %vm61 = vcmp.lt.s32.totalorder %v51, 1
    %v62 = vsel %vm61, %v58, %v60
    %v63 = vsel %vm61, %v60, %v58
    %v64 = vsub.f32 %v63, %v44
    %v65 = vsub.f32 %v62, %v45
    %v66 = vld [vmem:[#allocation2] sm:$0xff]
    %v67 = vld [vmem:[#allocation2 + $0x8] sm:$0xff]
    %v68 = vmul.f32 %v55, %v55
    %v69 = vmul.f32 %v56, %v56
    %v70 = vadd.f32 %v66, %v68
    %v71 = vadd.f32 %v67, %v69
    %72 = vst [vmem:[#allocation2] sm:$0xff] %v70
    %73 = vst [vmem:[#allocation2 + $0x8] sm:$0xff] %v71
    %v74 = vld [vmem:[#allocation3] sm:$0xff]
    %v75 = vld [vmem:[#allocation3 + $0x8] sm:$0xff]
    %v76 = vmul.f32 %v64, %v64
    %v77 = vmul.f32 %v65, %v65
    %v78 = vadd.f32 %v74, %v76
    %v79 = vadd.f32 %v75, %v77
    %80 = vst [vmem:[#allocation3] sm:$0xff] %v78
    %81 = vst [vmem:[#allocation3 + $0x8] sm:$0xff] %v79
    // Predicated region
    $region18: #{tpu_custom_call.1} parent=1 // pred_check
      %p82 = pneg %p36
    $region19: #{tpu_custom_call.1} parent=1 // pred_check_branch
      %84 = sbr.rel (%p82) target = $region21
    $region20: #{tpu_custom_call.1} parent=1 // pred_region
      %v85 = vadd.s32 %v51, 128
      %v86 = vld [vmem:[%s1] sm:$0x3]
      %87 = vrot.lane.b32.xlu0 %v51, 16
      %v88 = vpop.permute.xlu0 %87
      %89 = vrot.lane.b32.xlu0 %v85, 16
      %v90 = vpop.permute.xlu0 %89
      %v91 = vsel %vm52, %v88, %v90
      %v92 = vsel %vm52, %v90, %v88
      %v93 = vsub.s32 %v92, %v51
      %v94 = vsub.s32 %v91, %v85
      %95 = vrot.lane.b32.xlu0 %v51, 1
      %v96 = vpop.permute.xlu0 %95
      %97 = vrot.lane.b32.xlu0 %v85, 1
      %v98 = vpop.permute.xlu0 %97
      %v99 = vsel %vm61, %v96, %v98
      %v100 = vsel %vm61, %v98, %v96
      %v101 = vsub.s32 %v100, %v51
      %v102 = vsub.s32 %v99, %v85
      %v103 = vlaneseq
      %v104 = vshrl.u32 %v103, 7
      %v105 = vsub.s32 0, %v104
      %v106 = vrot.slane %v86, %v105
      %v107 = vlaneseq
      %v108 = vshrl.u32 %v107, 7
      %v109 = vsub.s32 1, %v108
      %v110 = vrot.slane %v86, %v109
      %111 = vrot.lane.b32.xlu0 %v106, 1
      %v112 = vpop.permute.xlu0 %111
      %113 = vrot.lane.b32.xlu0 %v110, 1
      %v114 = vpop.permute.xlu0 %113
      %v115 = vsel %vm61, %v112, %v114
      %v116 = vsel %vm61, %v114, %v112
      %vm117 = vcmp.eq.s32.totalorder %v93, 16
      %vm118 = vcmp.eq.s32.totalorder %v94, 16
      %vm119 = vcmp.eq.s32.totalorder %v93, 4294967280
      %vm120 = vcmp.eq.s32.totalorder %v94, 4294967280
      %vm121 = vmor %vm117, %vm119
      %vm122 = vmor %vm118, %vm120
      %v123 = vsel %vm121, 1, 0
      %v124 = vsel %vm122, 1, 0
      %v125 = vcvt.s32.f32 %v123
      %v126 = vcvt.s32.f32 %v124
      %vm127 = vcmp.eq.s32.totalorder %v101, 1
      %vm128 = vcmp.eq.s32.totalorder %v102, 1
      %vm129 = vcmp.eq.s32.totalorder %v101, 4294967295
      %vm130 = vcmp.eq.s32.totalorder %v102, 4294967295
      %vm131 = vmor %vm127, %vm129
      %vm132 = vmor %vm128, %vm130
      %vm133 = vcmp.eq.s32.totalorder %v116, %v106
      %vm134 = vcmp.eq.s32.totalorder %v115, %v110
      %vm135 = vmand %vm131, %vm133
      %vm136 = vmand %vm132, %vm134
      %v137 = vsel %vm135, 1, 0
      %v138 = vsel %vm136, 1, 0
      %v139 = vcvt.s32.f32 %v137
      %v140 = vcvt.s32.f32 %v138
      %v141 = vld [vmem:[#allocation2] sm:$0xff]
      %v142 = vld [vmem:[#allocation2 + $0x8] sm:$0xff]
      %v143 = vrot.slane %v141, 4
      %v144 = vadd.f32 %v141, %v143
      %v145 = vrot.slane %v144, 2
      %v146 = vadd.f32 %v144, %v145
      %v147 = vrot.slane %v146, 1
      %v148 = vadd.f32 %v146, %v147
      %v149 = vrot.slane %v142, 4
      %v150 = vadd.f32 %v142, %v149
      %v151 = vrot.slane %v150, 2
      %v152 = vadd.f32 %v150, %v151
      %v153 = vrot.slane %v152, 1
      %v154 = vadd.f32 %v152, %v153
      %v155 = vld [vmem:[#allocation3] sm:$0xff]
      %v156 = vld [vmem:[#allocation3 + $0x8] sm:$0xff]
      %v157 = vrot.slane %v155, 4
      %v158 = vadd.f32 %v155, %v157
      %v159 = vrot.slane %v158, 2
      %v160 = vadd.f32 %v158, %v159
      %v161 = vrot.slane %v160, 1
      %v162 = vadd.f32 %v160, %v161
      %v163 = vrot.slane %v156, 4
      %v164 = vadd.f32 %v156, %v163
      %v165 = vrot.slane %v164, 2
      %v166 = vadd.f32 %v164, %v165
      %v167 = vrot.slane %v166, 1
      %v168 = vadd.f32 %v166, %v167
      %v169 = vmul.f32 %v148, %v125
      %v170 = vmul.f32 %v154, %v126
      %vm171 = vcmask 1040384
      %v172 = vsel %vm171, %v169, 0.0
      %v173 = vsel %vm171, %v170, 0.0
      %v174 = vadd.f32 %v172, %v173
      %175 = vadd.xlane.f32.xlu0 %v174
      %v176 = vpop.xlane.xlu0 %175
      %v177 = vrot.slane %v176, 4
      %v178 = vadd.f32 %v176, %v177
      %v179 = vrot.slane %v178, 2
      %v180 = vadd.f32 %v178, %v179
      %v181 = vrot.slane %v180, 1
      %v182 = vadd.f32 %v180, %v181
      %s183 = vtos %v182
      %s184 = scalar_lea.smem [#allocation7], 0
      %185 = sst [smem:[%s184]] %s183
      %v186 = vmul.f32 %v162, %v139
      %v187 = vmul.f32 %v168, %v140
      %v188 = vsel %vm171, %v186, 0.0
      %v189 = vsel %vm171, %v187, 0.0
      %v190 = vadd.f32 %v188, %v189
      %191 = vadd.xlane.f32.xlu0 %v190
      %v192 = vpop.xlane.xlu0 %191
      %v193 = vrot.slane %v192, 4
      %v194 = vadd.f32 %v192, %v193
      %v195 = vrot.slane %v194, 2
      %v196 = vadd.f32 %v194, %v195
      %v197 = vrot.slane %v196, 1
      %v198 = vadd.f32 %v196, %v197
      %s199 = vtos %v198
      %s200 = scalar_lea.smem [#allocation8], 0
      %201 = sst [smem:[%s200]] %s199
    $region21: #{tpu_custom_call.1} parent=1 // pred_fallthru
      _
    // Predicated region
    $region22: #{tpu_custom_call.1} parent=1 // pred_check
      _
    $region23: #{tpu_custom_call.1} parent=1 // pred_check_branch
      %203 = sbr.rel (0) target = $region25
    $region24: #{tpu_custom_call.1} parent=1 // pred_region
      %s205 = ssub.s32 16, 16
      %206 = vsyncadd [#allocation6], %s205
      %209 = dma.smem_to_hbm [#allocation7], 16, %s2, [#allocation6]
    $region25: #{tpu_custom_call.1} parent=1 // pred_fallthru
      _
    // Predicated region
    $region26: #{tpu_custom_call.1} parent=1 // pred_check
      _
    $region27: #{tpu_custom_call.1} parent=1 // pred_check_branch
      %211 = sbr.rel (0) target = $region29
    $region28: #{tpu_custom_call.1} parent=1 // pred_region
      %s213 = ssub.s32 16, 16
      %214 = vsyncadd [#allocation9], %s213
      %217 = dma.smem_to_hbm [#allocation8], 16, %s3, [#allocation9]
    $region29: #{tpu_custom_call.1} parent=1 // pred_fallthru
      _
    // Predicated region
    $region30: #{tpu_custom_call.1} parent=1 // pred_check
      _
    $region31: #{tpu_custom_call.1} parent=1 // pred_check_branch
      %219 = sbr.rel (0) target = $region33
    $region32: #{tpu_custom_call.1} parent=1 // pred_region
      %220 = dma.done [#allocation6], 16
    $region33: #{tpu_custom_call.1} parent=1 // pred_fallthru
      _
    // Predicated region
    $region34: #{tpu_custom_call.1} parent=1 // pred_check
      _
    $region35: #{tpu_custom_call.1} parent=1 // pred_check_branch
      %222 = sbr.rel (0) target = $region37
    $region36: #{tpu_custom_call.1} parent=1 // pred_region
      %223 = dma.done [#allocation9], 16
    $region37: #{tpu_custom_call.1} parent=1 // pred_fallthru
      _
    %224 = sfence
    %225 = vsyncpa [#allocation5], 1
    %226 = vsyncpa [#allocation6], 1
    %227 = vsyncpa [#allocation9], 1

</llo_original>
